<compile_context>
chip_gen: v7x
topology: tpu7x:2x2x1
jax: 0.10.0
libtpu: 0.0.40
codegen_flags: <defaults>
</compile_context>

<pallas_src>
import functools

import jax
import jax.numpy as jnp
from jax.experimental import pallas as pl
from jax.experimental.pallas import tpu as pltpu

_TILE_HW_CAP = 16384  # lanes per grid step; (4+8+8)*16384*4B ~= 1.25 MB/step f32


def _leaky_relu(x, slope=0.2):
    return jnp.where(x > 0, x, slope * x)


def guide_kernel(rgb_ref, fe_ref, w1_ref, b1_ref, w2a_ref, w2b_ref, b2_ref, out_ref):
    # rgb_ref: (C_in1, T)     fe_ref : (C_fe, T)
    # w1_ref : (C_out, C_in1) b1_ref : (C_out, 1)
    # w2a_ref: (C_out, C_out) w2b_ref: (C_out, C_fe)  b2_ref: (C_out, 1)
    # out_ref: (C_out, T)      -- T is the spatial (lane) tile, multiple of 128
    y1 = jnp.dot(w1_ref[...], rgb_ref[...], preferred_element_type=jnp.float32)
    y1 = _leaky_relu(y1 + b1_ref[...])  # conv1 + folded BN + LeakyReLU(0.2)

    # concat(y1, fe) convolved by W2  ==  W2a @ y1 + W2b @ fe
    y2 = jnp.dot(w2a_ref[...], y1, preferred_element_type=jnp.float32)
    y2 = y2 + jnp.dot(w2b_ref[...], fe_ref[...], preferred_element_type=jnp.float32)
    out_ref[...] = _leaky_relu(y2 + b2_ref[...]).astype(out_ref.dtype)


def _fold_bn(w_oc_ic, gamma, beta, mean, var, eps=1e-5):
    """Fold eval-mode BatchNorm into a 1x1 conv (no conv bias, since bn=True).

    w_oc_ic: (C_out, C_in) conv weight (kernel=1 squeezed).
    Returns (w_oc_ic_eff, bias_oc_1) for y = w_eff @ x + bias.
    """
    scale = gamma / jnp.sqrt(var + eps)          # (C_out,)
    w_eff = w_oc_ic * scale[:, None]             # scale each output channel
    b_eff = beta - mean * scale                  # (C_out,)
    return w_eff, b_eff.reshape(-1, 1)           # (C_out, C_in), (C_out, 1)


@jax.jit
def guide_forward(fe_dep, fd_rgb, params):
    """fe_dep: (N, C_fe, H, W), fd_rgb: (N, C_in1, H, W) -> (N, C_out, H, W)."""
    w1, b1, w2a, w2b, b2 = params
    n, c_in1, h, w = fd_rgb.shape
    c_fe = fe_dep.shape[1]
    c_out = w1.shape[0]

    hw = h * w
    # Lane tile: multiple of 128, capped so per-step traffic stays ~1 MB.
    tile_hw = min(pl.cdiv(hw, 128) * 128, _TILE_HW_CAP)
    hw_p = pl.cdiv(hw, tile_hw) * tile_hw

    rgb = fd_rgb.reshape(n, c_in1, hw)
    fe = fe_dep.reshape(n, c_fe, hw)
    if hw_p != hw:  # pad the spatial axis; padded lanes are cropped afterwards
        rgb = jnp.pad(rgb, ((0, 0), (0, 0), (0, hw_p - hw)))
        fe = jnp.pad(fe, ((0, 0), (0, 0), (0, hw_p - hw)))

    grid = (n, hw_p // tile_hw)

    out = pl.pallas_call(
        guide_kernel,
        out_shape=jax.ShapeDtypeStruct((n, c_out, hw_p), jnp.float32),
        grid_spec=pltpu.PrefetchScalarGridSpec(
            num_scalar_prefetch=0,
            grid=grid,
            in_specs=[
                pl.BlockSpec((None, c_in1, tile_hw), lambda b, t: (b, 0, t)),
                pl.BlockSpec((None, c_fe, tile_hw), lambda b, t: (b, 0, t)),
                # Weights / biases: constant block, resident across grid steps.
                pl.BlockSpec((c_out, c_in1), lambda b, t: (0, 0)),
                pl.BlockSpec((c_out, 1), lambda b, t: (0, 0)),
                pl.BlockSpec((c_out, c_out), lambda b, t: (0, 0)),
                pl.BlockSpec((c_out, c_fe), lambda b, t: (0, 0)),
                pl.BlockSpec((c_out, 1), lambda b, t: (0, 0)),
            ],
            out_specs=pl.BlockSpec((None, c_out, tile_hw), lambda b, t: (b, 0, t)),
        ),
        compiler_params=pltpu.CompilerParams(
            dimension_semantics=("parallel", "parallel")),
    )(rgb, fe, w1, b1, w2a, w2b, b2)

    if hw_p != hw:
        out = out[:, :, :hw]
    return out.reshape(n, c_out, h, w)  # already NCHW — no output transpose


def make_params(key, c_in1, c_fe, c_out):
    """Deterministic synthetic parameters for conv1/conv2 + folded BN."""
    c_in2 = c_out + c_fe  # channels after concat (fd, fe)
    ks = jax.random.split(key, 10)

    # conv1: (C_out, C_in1) weight, no bias (bn=True)
    w1_raw = jax.random.normal(ks[0], (c_out, c_in1), jnp.float32) * 0.3
    g1 = 1.0 + 0.1 * jax.random.normal(ks[1], (c_out,), jnp.float32)
    be1 = 0.1 * jax.random.normal(ks[2], (c_out,), jnp.float32)
    mu1 = 0.05 * jax.random.normal(ks[3], (c_out,), jnp.float32)
    var1 = 1.0 + 0.1 * jax.nn.sigmoid(jax.random.normal(ks[4], (c_out,), jnp.float32))
    w1, b1 = _fold_bn(w1_raw, g1, be1, mu1, var1)

    # conv2: (C_out, C_in2) weight, no bias (bn=True)
    w2_raw = jax.random.normal(ks[5], (c_out, c_in2), jnp.float32) * 0.3
    g2 = 1.0 + 0.1 * jax.random.normal(ks[6], (c_out,), jnp.float32)
    be2 = 0.1 * jax.random.normal(ks[7], (c_out,), jnp.float32)
    mu2 = 0.05 * jax.random.normal(ks[8], (c_out,), jnp.float32)
    var2 = 1.0 + 0.1 * jax.nn.sigmoid(jax.random.normal(ks[9], (c_out,), jnp.float32))
    w2, b2 = _fold_bn(w2_raw, g2, be2, mu2, var2)

    # split conv2 weight for the fused concat: columns [:c_out] hit conv1 output,
    # columns [c_out:] hit fe_dep (concat order in _concat is (fd, fe)).
    w2a = w2[:, :c_out]
    w2b = w2[:, c_out:]
    return (w1, b1, w2a, w2b, b2)


def reference_forward(fe_dep, fd_rgb, params):
    """Pure-JAX reference matching the PyTorch Guide.forward (vt=None, cat)."""
    w1, b1, w2a, w2b, b2 = params
    y1 = jnp.einsum("oi,nihw->nohw", w1, fd_rgb) + b1.reshape(1, -1, 1, 1)
    y1 = _leaky_relu(y1)
    y2 = (jnp.einsum("oi,nihw->nohw", w2a, y1)
          + jnp.einsum("oi,nihw->nohw", w2b, fe_dep)
          + b2.reshape(1, -1, 1, 1))
    return _leaky_relu(y2)


if __name__ == "__main__":
    # Small shapes consistent with the module: Guide(ch_in1=4, ch_in2=16, ch_out=8)
    # with fe_dep carrying 8 channels (ch_in2 = ch_out + C_fe).
    N, H, W = 2, 16, 16
    C_IN1, C_FE, C_OUT = 4, 8, 8

    key = jax.random.PRNGKey(0)
    k_rgb, k_fe, k_params = jax.random.split(key, 3)

    fd_rgb = jax.random.normal(k_rgb, (N, C_IN1, H, W), jnp.float32)
    fe_dep = jax.random.normal(k_fe, (N, C_FE, H, W), jnp.float32)
    params = make_params(k_params, C_IN1, C_FE, C_OUT)

    out = guide_forward(fe_dep, fd_rgb, params)
    out = jax.block_until_ready(out)

    ref = reference_forward(fe_dep, fd_rgb, params)
    assert out.shape == (N, C_OUT, H, W), out.shape
    assert jnp.allclose(out, ref, atol=1e-5, rtol=1e-5), float(jnp.abs(out - ref).max())

    # TODO(synk): `_remove_extra_pad` is undefined in the source module; assumed to be
    # an identity crop when fd and fe share spatial size (as they do here).
    print("KERNEL_OK")
</pallas_src>

<mosaic_0001>
module attributes {stable_mosaic.version = 11 : i64} {
  func.func @guide_kernel(%arg0: i32, %arg1: i32, %arg2: memref<1x4x256xf32, #tpu.memory_space<vmem>>, %arg3: memref<1x8x256xf32, #tpu.memory_space<vmem>>, %arg4: memref<8x4xf32, #tpu.memory_space<vmem>>, %arg5: memref<8x1xf32, #tpu.memory_space<vmem>>, %arg6: memref<8x8xf32, #tpu.memory_space<vmem>>, %arg7: memref<8x8xf32, #tpu.memory_space<vmem>>, %arg8: memref<8x1xf32, #tpu.memory_space<vmem>>, %arg9: memref<1x8x256xf32, #tpu.memory_space<vmem>>) attributes {dimension_semantics = [#tpu.dimension_semantics<parallel>, #tpu.dimension_semantics<parallel>], iteration_bounds = array<i64: 2, 1>, scalar_prefetch = 0 : i64, scratch_operands = 0 : i64, tpu.core_type = #tpu.core_type<tc>, window_params = [{transform_indices = @transform_0, window_bounds = array<i64: 1, 4, 256>}, {transform_indices = @transform_1, window_bounds = array<i64: 1, 8, 256>}, {pipeline_mode = #tpu.pipeline_mode<synchronous>, transform_indices = @transform_2, window_bounds = array<i64: 8, 4>}, {pipeline_mode = #tpu.pipeline_mode<synchronous>, transform_indices = @transform_3, window_bounds = array<i64: 8, 1>}, {pipeline_mode = #tpu.pipeline_mode<synchronous>, transform_indices = @transform_4, window_bounds = array<i64: 8, 8>}, {pipeline_mode = #tpu.pipeline_mode<synchronous>, transform_indices = @transform_5, window_bounds = array<i64: 8, 8>}, {pipeline_mode = #tpu.pipeline_mode<synchronous>, transform_indices = @transform_6, window_bounds = array<i64: 8, 1>}, {transform_indices = @transform_7, window_bounds = array<i64: 1, 8, 256>}]} {
    %c0 = arith.constant 0 : index
    %c0_0 = arith.constant 0 : index
    %0 = vector.load %arg4[%c0, %c0_0] : memref<8x4xf32, #tpu.memory_space<vmem>>, vector<8x4xf32>
    %c0_1 = arith.constant 0 : index
    %c0_2 = arith.constant 0 : index
    %c0_3 = arith.constant 0 : index
    %1 = vector.load %arg2[%c0_1, %c0_2, %c0_3] : memref<1x4x256xf32, #tpu.memory_space<vmem>>, vector<1x4x256xf32>
    %2 = vector.shape_cast %1 : vector<1x4x256xf32> to vector<4x256xf32>
    %cst = arith.constant dense<0.000000e+00> : vector<8x256xf32>
    %3 = tpu.matmul %0, %2, %cst {dimension_numbers = #tpu.dot_dimension_numbers<[1], [0], [0], [1], [0, 0, 1, 1], [], []>} : vector<8x4xf32>, vector<4x256xf32>, vector<8x256xf32> -> vector<8x256xf32>
    %c0_4 = arith.constant 0 : index
    %c0_5 = arith.constant 0 : index
    %4 = vector.load %arg5[%c0_4, %c0_5] : memref<8x1xf32, #tpu.memory_space<vmem>>, vector<8x1xf32>
    %5 = vector.broadcast %4 : vector<8x1xf32> to vector<8x256xf32>
    %6 = arith.addf %3, %5 : vector<8x256xf32>
    %cst_6 = arith.constant 0.000000e+00 : f32
    %7 = vector.broadcast %cst_6 : f32 to vector<8x256xf32>
    %8 = arith.cmpf ogt, %6, %7 : vector<8x256xf32>
    %cst_7 = arith.constant 2.000000e-01 : f32
    %9 = vector.broadcast %cst_7 : f32 to vector<8x256xf32>
    %10 = arith.mulf %9, %6 : vector<8x256xf32>
    %11 = arith.select %8, %6, %10 : vector<8x256xi1>, vector<8x256xf32>
    %c0_8 = arith.constant 0 : index
    %c0_9 = arith.constant 0 : index
    %12 = vector.load %arg6[%c0_8, %c0_9] : memref<8x8xf32, #tpu.memory_space<vmem>>, vector<8x8xf32>
    %cst_10 = arith.constant dense<0.000000e+00> : vector<8x256xf32>
    %13 = tpu.matmul %12, %11, %cst_10 {dimension_numbers = #tpu.dot_dimension_numbers<[1], [0], [0], [1], [0, 0, 1, 1], [], []>} : vector<8x8xf32>, vector<8x256xf32>, vector<8x256xf32> -> vector<8x256xf32>
    %c0_11 = arith.constant 0 : index
    %c0_12 = arith.constant 0 : index
    %14 = vector.load %arg7[%c0_11, %c0_12] : memref<8x8xf32, #tpu.memory_space<vmem>>, vector<8x8xf32>
    %c0_13 = arith.constant 0 : index
    %c0_14 = arith.constant 0 : index
    %c0_15 = arith.constant 0 : index
    %15 = vector.load %arg3[%c0_13, %c0_14, %c0_15] : memref<1x8x256xf32, #tpu.memory_space<vmem>>, vector<1x8x256xf32>
    %16 = vector.shape_cast %15 : vector<1x8x256xf32> to vector<8x256xf32>
    %cst_16 = arith.constant dense<0.000000e+00> : vector<8x256xf32>
    %17 = tpu.matmul %14, %16, %cst_16 {dimension_numbers = #tpu.dot_dimension_numbers<[1], [0], [0], [1], [0, 0, 1, 1], [], []>} : vector<8x8xf32>, vector<8x256xf32>, vector<8x256xf32> -> vector<8x256xf32>
    %18 = arith.addf %13, %17 : vector<8x256xf32>
    %c0_17 = arith.constant 0 : index
    %c0_18 = arith.constant 0 : index
    %19 = vector.load %arg8[%c0_17, %c0_18] : memref<8x1xf32, #tpu.memory_space<vmem>>, vector<8x1xf32>
    %20 = vector.broadcast %19 : vector<8x1xf32> to vector<8x256xf32>
    %21 = arith.addf %18, %20 : vector<8x256xf32>
    %cst_19 = arith.constant 0.000000e+00 : f32
    %22 = vector.broadcast %cst_19 : f32 to vector<8x256xf32>
    %23 = arith.cmpf ogt, %21, %22 : vector<8x256xf32>
    %cst_20 = arith.constant 2.000000e-01 : f32
    %24 = vector.broadcast %cst_20 : f32 to vector<8x256xf32>
    %25 = arith.mulf %24, %21 : vector<8x256xf32>
    %26 = arith.select %23, %21, %25 : vector<8x256xi1>, vector<8x256xf32>
    %c0_21 = arith.constant 0 : index
    %c0_22 = arith.constant 0 : index
    %c0_23 = arith.constant 0 : index
    %27 = vector.load %arg9[%c0_21, %c0_22, %c0_23] : memref<1x8x256xf32, #tpu.memory_space<vmem>>, vector<1x8x256xf32>
    %28 = vector.shape_cast %27 : vector<1x8x256xf32> to vector<8x256xf32>
    %29 = vector.shape_cast %26 : vector<8x256xf32> to vector<1x8x256xf32>
    tpu.vector_store %arg9[%c0_21, %c0_22, %c0_23], %29 {strides = array<i32>} : memref<1x8x256xf32, #tpu.memory_space<vmem>>, vector<1x8x256xf32>,
    return
  }
  func.func @transform_0(%arg0: i32, %arg1: i32) -> (i32, i32, i32) {
    %c0_i32 = arith.constant 0 : i32
    %c0_i32_0 = arith.constant 0 : i32
    return %arg0, %c0_i32, %arg1 : i32, i32, i32
  }
  func.func @transform_1(%arg0: i32, %arg1: i32) -> (i32, i32, i32) {
    %c0_i32 = arith.constant 0 : i32
    %c0_i32_0 = arith.constant 0 : i32
    return %arg0, %c0_i32, %arg1 : i32, i32, i32
  }
  func.func @transform_2(%arg0: i32, %arg1: i32) -> (i32, i32) {
    %c0_i32 = arith.constant 0 : i32
    %c0_i32_0 = arith.constant 0 : i32
    %c0_i32_1 = arith.constant 0 : i32
    return %c0_i32, %c0_i32_0 : i32, i32
  }
  func.func @transform_3(%arg0: i32, %arg1: i32) -> (i32, i32) {
    %c0_i32 = arith.constant 0 : i32
    %c0_i32_0 = arith.constant 0 : i32
    %c0_i32_1 = arith.constant 0 : i32
    return %c0_i32, %c0_i32_0 : i32, i32
  }
  func.func @transform_4(%arg0: i32, %arg1: i32) -> (i32, i32) {
    %c0_i32 = arith.constant 0 : i32
    %c0_i32_0 = arith.constant 0 : i32
    %c0_i32_1 = arith.constant 0 : i32
    return %c0_i32, %c0_i32_0 : i32, i32
  }
  func.func @transform_5(%arg0: i32, %arg1: i32) -> (i32, i32) {
    %c0_i32 = arith.constant 0 : i32
    %c0_i32_0 = arith.constant 0 : i32
    %c0_i32_1 = arith.constant 0 : i32
    return %c0_i32, %c0_i32_0 : i32, i32
  }
  func.func @transform_6(%arg0: i32, %arg1: i32) -> (i32, i32) {
    %c0_i32 = arith.constant 0 : i32
    %c0_i32_0 = arith.constant 0 : i32
    %c0_i32_1 = arith.constant 0 : i32
    return %c0_i32, %c0_i32_0 : i32, i32
  }
  func.func @transform_7(%arg0: i32, %arg1: i32) -> (i32, i32, i32) {
    %c0_i32 = arith.constant 0 : i32
    %c0_i32_0 = arith.constant 0 : i32
    return %arg0, %c0_i32, %arg1 : i32, i32, i32
  }
}

</mosaic_0001>

<llo_original>
// kernel: guide_forward.1
$region0: #{guide_forward.1}
  #allocation0 [shape = 'u32[]', space=smem, size = 0x4, offset = 0x4, fixed_abs, tag = 'smem constant byte address 0x4 - core index']
  #allocation1 [shape = 'u32[144,128]{1,0:T(1,128)}', space=vmem, size = 0x12000, scoped, tag = 'internal scratch']
  %s0 = inlined_call_operand.vmem [shape: f32[2,4,256], index: 0, kind: input, shape index: {}]
  %s1 = inlined_call_operand.vmem [shape: f32[2,8,256], index: 1, kind: input, shape index: {}]
  %s2 = inlined_call_operand.vmem [shape: f32[8,4], index: 2, kind: input, shape index: {}]
  %s3 = inlined_call_operand.vmem [shape: f32[8,1], index: 3, kind: input, shape index: {}]
  %s4 = inlined_call_operand.vmem [shape: f32[8,8], index: 4, kind: input, shape index: {}]
  %s5 = inlined_call_operand.vmem [shape: f32[8,8], index: 5, kind: input, shape index: {}]
  %s6 = inlined_call_operand.vmem [shape: f32[8,1], index: 6, kind: input, shape index: {}]
  %s7 = inlined_call_operand.vmem [shape: f32[2,8,256], index: 7, kind: output, shape index: {}]
  %s8 = sld [smem:[#allocation0]]
  $region61: #{guide_forward.1} parent=0
    _
  %s10 = ssub.s32 1, %s8
  %s11 = scalar_select 0, %s10, %s8
  loop: start=0, step=1, limit=4
  $region2: #{guide_forward.1} parent=0 // loop_pre_header
    _
  $region3: #{guide_forward.1} parent=0 // loop_header
    %s13 = sphi 0, %s17
    %p14 = scmp.ge.s32.totalorder %s13, 4
    %s20 = sphi 0, %s32
    %s21 = sphi 0, %s28
    %s22 = sphi 0, %s20
    %s23 = sphi 0, %s21
    %s24 = sphi 0, %s22
    %s25 = sphi 0, %s23
    %s37 = sphi 0, %s39
    %s40 = sphi 0, %s37
    %s41 = sphi 0, %s40
    %s57 = sphi 0, %s41
    %s65 = sphi 0, %s67
    %s68 = sphi 0, %s65
    %s69 = sphi 0, %s68
    %s85 = sphi 0, %s69
    %s89 = sphi 0, %s89
    %s91 = sphi 0, %s89
    %s92 = sphi 0, %s91
    %s106 = sphi 0, %s92
    %s110 = sphi 0, %s110
    %s112 = sphi 0, %s110
    %s113 = sphi 0, %s112
    %s127 = sphi 0, %s113
    %s131 = sphi 0, %s131
    %s133 = sphi 0, %s131
    %s134 = sphi 0, %s133
    %s148 = sphi 0, %s134
    %s152 = sphi 0, %s152
    %s154 = sphi 0, %s152
    %s155 = sphi 0, %s154
    %s169 = sphi 0, %s155
    %s173 = sphi 0, %s173
    %s175 = sphi 0, %s173
    %s176 = sphi 0, %s175
    %s190 = sphi 0, %s176
    %s198 = sphi 0, %s200
    %s201 = sphi 0, %s198
    %s202 = sphi 0, %s201
    %s218 = sphi 0, %s202
  $region4: #{guide_forward.1} parent=0 // loop_header_branch
    %16 = sbr.rel (%p14) target = $region8
  $region5: #{guide_forward.1} parent=0 // loop_body
    %s18 = ssub.s32 %s13, 1
    %s19 = ssub.s32 %s13, 2
    %s26 = sadd.s32 1, %s21
    %p27 = scmp.ge.s32.totalorder %s26, 1
    %s28 = scalar_select %p27, 0, %s26
    %s29 = sadd.s32 1, %s20
    %s30 = scalar_select %p27, %s29, %s20
    %p31 = scmp.ge.s32.totalorder %s30, 2
    %s32 = scalar_select %p31, 0, %s30
    %s33 = ssub.s32 %s20, %s32
    %s34 = ssub.s32 %s21, %s28
    %s35 = sor.u32 %s33, %s34
    %p36 = scmp.eq.s32.totalorder %s35, 0
    %s38 = sadd.s32 %s37, 1
    %s39 = scalar_select %p36, %s37, %s38
    %p42 = pneg %p36
    %p43 = scmp.eq.s32.totalorder %s13, 1
    %p44 = por %p42, %p43
    %p45 = scmp.ne.s32.totalorder %s37, %s40
    %p46 = scmp.eq.s32.totalorder %s13, 0
    %p47 = por %p45, %p46
    %p48 = scmp.ne.s32.totalorder %s37, %s40
    %p49 = scmp.eq.s32.totalorder %s18, 1
    %p50 = por %p48, %p49
    %p51 = scmp.ne.s32.totalorder %s40, %s41
    %p52 = scmp.eq.s32.totalorder %s18, 0
    %p53 = por %p51, %p52
    %p54 = scmp.ne.s32.totalorder %s40, %s41
    %p55 = scmp.eq.s32.totalorder %s19, 1
    %p56 = por %p54, %p55
    %p58 = scmp.ne.s32.totalorder %s41, %s57
    %p59 = scmp.eq.s32.totalorder %s19, 0
    %p60 = por %p58, %p59
    %s61 = ssub.s32 %s20, %s32
    %s62 = ssub.s32 %s21, %s28
    %s63 = sor.u32 %s61, %s62
    %p64 = scmp.eq.s32.totalorder %s63, 0
    %s66 = sadd.s32 %s65, 1
    %s67 = scalar_select %p64, %s65, %s66
    %p70 = pneg %p64
    %p71 = scmp.eq.s32.totalorder %s13, 1
    %p72 = por %p70, %p71
    %p73 = scmp.ne.s32.totalorder %s65, %s68
    %p74 = scmp.eq.s32.totalorder %s13, 0
    %p75 = por %p73, %p74
    %p76 = scmp.ne.s32.totalorder %s65, %s68
    %p77 = scmp.eq.s32.totalorder %s18, 1
    %p78 = por %p76, %p77
    %p79 = scmp.ne.s32.totalorder %s68, %s69
    %p80 = scmp.eq.s32.totalorder %s18, 0
    %p81 = por %p79, %p80
    %p82 = scmp.ne.s32.totalorder %s68, %s69
    %p83 = scmp.eq.s32.totalorder %s19, 1
    %p84 = por %p82, %p83
    %p86 = scmp.ne.s32.totalorder %s69, %s85
    %p87 = scmp.eq.s32.totalorder %s19, 0
    %p88 = por %p86, %p87
    %s90 = sadd.s32 %s89, 1
    %p93 = scmp.eq.s32.totalorder %s13, 1
    %p94 = scmp.ne.s32.totalorder %s89, %s91
    %p95 = scmp.eq.s32.totalorder %s13, 0
    %p96 = por %p94, %p95
    %p97 = scmp.ne.s32.totalorder %s89, %s91
    %p98 = scmp.eq.s32.totalorder %s18, 1
    %p99 = por %p97, %p98
    %p100 = scmp.ne.s32.totalorder %s91, %s92
    %p101 = scmp.eq.s32.totalorder %s18, 0
    %p102 = por %p100, %p101
    %p103 = scmp.ne.s32.totalorder %s91, %s92
    %p104 = scmp.eq.s32.totalorder %s19, 1
    %p105 = por %p103, %p104
    %p107 = scmp.ne.s32.totalorder %s92, %s106
    %p108 = scmp.eq.s32.totalorder %s19, 0
    %p109 = por %p107, %p108
    %s111 = sadd.s32 %s110, 1
    %p114 = scmp.eq.s32.totalorder %s13, 1
    %p115 = scmp.ne.s32.totalorder %s110, %s112
    %p116 = scmp.eq.s32.totalorder %s13, 0
    %p117 = por %p115, %p116
    %p118 = scmp.ne.s32.totalorder %s110, %s112
    %p119 = scmp.eq.s32.totalorder %s18, 1
    %p120 = por %p118, %p119
    %p121 = scmp.ne.s32.totalorder %s112, %s113
    %p122 = scmp.eq.s32.totalorder %s18, 0
    %p123 = por %p121, %p122
    %p124 = scmp.ne.s32.totalorder %s112, %s113
    %p125 = scmp.eq.s32.totalorder %s19, 1
    %p126 = por %p124, %p125
    %p128 = scmp.ne.s32.totalorder %s113, %s127
    %p129 = scmp.eq.s32.totalorder %s19, 0
    %p130 = por %p128, %p129
    %s132 = sadd.s32 %s131, 1
    %p135 = scmp.eq.s32.totalorder %s13, 1
    %p136 = scmp.ne.s32.totalorder %s131, %s133
    %p137 = scmp.eq.s32.totalorder %s13, 0
    %p138 = por %p136, %p137
    %p139 = scmp.ne.s32.totalorder %s131, %s133
    %p140 = scmp.eq.s32.totalorder %s18, 1
    %p141 = por %p139, %p140
    %p142 = scmp.ne.s32.totalorder %s133, %s134
    %p143 = scmp.eq.s32.totalorder %s18, 0
    %p144 = por %p142, %p143
    %p145 = scmp.ne.s32.totalorder %s133, %s134
    %p146 = scmp.eq.s32.totalorder %s19, 1
    %p147 = por %p145, %p146
    %p149 = scmp.ne.s32.totalorder %s134, %s148
    %p150 = scmp.eq.s32.totalorder %s19, 0
    %p151 = por %p149, %p150
    %s153 = sadd.s32 %s152, 1
    %p156 = scmp.eq.s32.totalorder %s13, 1
    %p157 = scmp.ne.s32.totalorder %s152, %s154
    %p158 = scmp.eq.s32.totalorder %s13, 0
    %p159 = por %p157, %p158
    %p160 = scmp.ne.s32.totalorder %s152, %s154
    %p161 = scmp.eq.s32.totalorder %s18, 1
    %p162 = por %p160, %p161
    %p163 = scmp.ne.s32.totalorder %s154, %s155
    %p164 = scmp.eq.s32.totalorder %s18, 0
    %p165 = por %p163, %p164
    %p166 = scmp.ne.s32.totalorder %s154, %s155
    %p167 = scmp.eq.s32.totalorder %s19, 1
    %p168 = por %p166, %p167
    %p170 = scmp.ne.s32.totalorder %s155, %s169
    %p171 = scmp.eq.s32.totalorder %s19, 0
    %p172 = por %p170, %p171
    %s174 = sadd.s32 %s173, 1
    %p177 = scmp.eq.s32.totalorder %s13, 1
    %p178 = scmp.ne.s32.totalorder %s173, %s175
    %p179 = scmp.eq.s32.totalorder %s13, 0
    %p180 = por %p178, %p179
    %p181 = scmp.ne.s32.totalorder %s173, %s175
    %p182 = scmp.eq.s32.totalorder %s18, 1
    %p183 = por %p181, %p182
    %p184 = scmp.ne.s32.totalorder %s175, %s176
    %p185 = scmp.eq.s32.totalorder %s18, 0
    %p186 = por %p184, %p185
    %p187 = scmp.ne.s32.totalorder %s175, %s176
    %p188 = scmp.eq.s32.totalorder %s19, 1
    %p189 = por %p187, %p188
    %p191 = scmp.ne.s32.totalorder %s176, %s190
    %p192 = scmp.eq.s32.totalorder %s19, 0
    %p193 = por %p191, %p192
    %s194 = ssub.s32 %s20, %s32
    %s195 = ssub.s32 %s21, %s28
    %s196 = sor.u32 %s194, %s195
    %p197 = scmp.eq.s32.totalorder %s196, 0
    %s199 = sadd.s32 %s198, 1
    %s200 = scalar_select %p197, %s198, %s199
    %p203 = pneg %p197
    %p204 = scmp.eq.s32.totalorder %s13, 1
    %p205 = por %p203, %p204
    %p206 = scmp.ne.s32.totalorder %s198, %s201
    %p207 = scmp.eq.s32.totalorder %s13, 0
    %p208 = por %p206, %p207
    %p209 = scmp.ne.s32.totalorder %s198, %s201
    %p210 = scmp.eq.s32.totalorder %s18, 1
    %p211 = por %p209, %p210
    %p212 = scmp.ne.s32.totalorder %s201, %s202
    %p213 = scmp.eq.s32.totalorder %s18, 0
    %p214 = por %p212, %p213
    %p215 = scmp.ne.s32.totalorder %s201, %s202
    %p216 = scmp.eq.s32.totalorder %s19, 1
    %p217 = por %p215, %p216
    %p219 = scmp.ne.s32.totalorder %s202, %s218
    %p220 = scmp.eq.s32.totalorder %s19, 0
    %p221 = por %p219, %p220
    %p222 = scmp.le.s32.totalorder 1, %s13
    %p223 = scmp.lt.s32.totalorder %s13, 3
    %p224 = pnand %p222, %p223
    %p225 = pneg %p224
    // Predicated region
    $region9: #{guide_forward.1} parent=5 // pred_check
      _
    $region10: #{guide_forward.1} parent=5 // pred_check_branch
      %227 = sbr.rel (%p224) target = $region12
    $region11: #{guide_forward.1} parent=5 // pred_region
      %s228 = ssub.s32 %s13, 1
      // Predicated region
      $region13: #{guide_forward.1} parent=11 // pred_check
        %p229 = pneg %p102
      $region14: #{guide_forward.1} parent=11 // pred_check_branch
        %231 = sbr.rel (%p229) target = $region16
      $region15: #{guide_forward.1} parent=11 // pred_region
        _
      $region16: #{guide_forward.1} parent=11 // pred_fallthru
        _
      // Predicated region
      $region17: #{guide_forward.1} parent=11 // pred_check
        %p232 = pneg %p123
      $region18: #{guide_forward.1} parent=11 // pred_check_branch
        %234 = sbr.rel (%p232) target = $region20
      $region19: #{guide_forward.1} parent=11 // pred_region
        _
      $region20: #{guide_forward.1} parent=11 // pred_fallthru
        _
      // Predicated region
      $region21: #{guide_forward.1} parent=11 // pred_check
        %p235 = pneg %p144
      $region22: #{guide_forward.1} parent=11 // pred_check_branch
        %237 = sbr.rel (%p235) target = $region24
      $region23: #{guide_forward.1} parent=11 // pred_region
        _
      $region24: #{guide_forward.1} parent=11 // pred_fallthru
        _
      // Predicated region
      $region25: #{guide_forward.1} parent=11 // pred_check
        %p238 = pneg %p165
      $region26: #{guide_forward.1} parent=11 // pred_check_branch
        %240 = sbr.rel (%p238) target = $region28
      $region27: #{guide_forward.1} parent=11 // pred_region
        _
      $region28: #{guide_forward.1} parent=11 // pred_fallthru
        _
      // Predicated region
      $region29: #{guide_forward.1} parent=11 // pred_check
        %p241 = pneg %p186
      $region30: #{guide_forward.1} parent=11 // pred_check_branch
        %243 = sbr.rel (%p241) target = $region32
      $region31: #{guide_forward.1} parent=11 // pred_region
        _
      $region32: #{guide_forward.1} parent=11 // pred_fallthru
        _
    $region12: #{guide_forward.1} parent=5 // pred_fallthru
      _
    %p244 = scmp.lt.s32.totalorder %s13, 2
    // Predicated region
    $region33: #{guide_forward.1} parent=5 // pred_check
      %p245 = pneg %p244
    $region34: #{guide_forward.1} parent=5 // pred_check_branch
      %247 = sbr.rel (%p245) target = $region36
    $region35: #{guide_forward.1} parent=5 // pred_region
      // Predicated region
      $region37: #{guide_forward.1} parent=35 // pred_check
        %p248 = pneg %p47
      $region38: #{guide_forward.1} parent=35 // pred_check_branch
        %250 = sbr.rel (%p248) target = $region40
      $region39: #{guide_forward.1} parent=35 // pred_region
        %s251 = smul.u32 2, %s21
        %p252 = scmp.lt.s32.totalorder %s20, 1
        %s253 = scalar_select %p252, %s20, 1
        %p254 = scmp.lt.s32.totalorder %s251, 1
        %s255 = scalar_select %p254, %s251, 1
        %s256 = smul.addr %s253, 2
        %s257 = sadd.s32 %s255, %s256
        %s258 = smul.addr %s257, 4
        %s259 = scalar_lea.vmem %s0, %s258
        %s260 = smul.u32 2, %s21
      $region40: #{guide_forward.1} parent=35 // pred_fallthru
        _
      // Predicated region
      $region41: #{guide_forward.1} parent=35 // pred_check
        %p261 = pneg %p75
      $region42: #{guide_forward.1} parent=35 // pred_check_branch
        %263 = sbr.rel (%p261) target = $region44
      $region43: #{guide_forward.1} parent=35 // pred_region
        %s264 = smul.u32 2, %s21
        %p265 = scmp.lt.s32.totalorder %s20, 1
        %s266 = scalar_select %p265, %s20, 1
        %p267 = scmp.lt.s32.totalorder %s264, 1
        %s268 = scalar_select %p267, %s264, 1
        %s269 = smul.addr %s266, 2
        %s270 = sadd.s32 %s268, %s269
        %s271 = smul.addr %s270, 8
        %s272 = scalar_lea.vmem %s1, %s271
        %s273 = smul.u32 2, %s21
      $region44: #{guide_forward.1} parent=35 // pred_fallthru
        _
    $region36: #{guide_forward.1} parent=5 // pred_fallthru
      _
    %p274 = scmp.le.s32.totalorder 1, %s13
    %p275 = scmp.lt.s32.totalorder %s13, 3
    %p276 = pnand %p274, %p275
    %p277 = pneg %p276
    // Predicated region
    $region45: #{guide_forward.1} parent=5 // pred_check
      _
    $region46: #{guide_forward.1} parent=5 // pred_check_branch
      %279 = sbr.rel (%p276) target = $region48
    $region47: #{guide_forward.1} parent=5 // pred_region
      %s280 = ssub.s32 %s13, 1
      %s281 = smul.u32 2, %s23
      %p282 = scmp.lt.s32.totalorder %s22, 1
      %s283 = scalar_select %p282, %s22, 1
      %p284 = scmp.lt.s32.totalorder %s281, 1
      %s285 = scalar_select %p284, %s281, 1
      %s286 = smul.addr %s283, 2
      %s287 = sadd.s32 %s285, %s286
      %s288 = smul.addr %s287, 4
      %s289 = scalar_lea.vmem %s0, %s288
      %p290 = pneg %p53
      %p291 = pneg %p50
      %s292 = smul.u32 2, %s23
      %p293 = scmp.lt.s32.totalorder %s22, 1
      %s294 = scalar_select %p293, %s22, 1
      %p295 = scmp.lt.s32.totalorder %s292, 1
      %s296 = scalar_select %p295, %s292, 1
      %s297 = smul.addr %s294, 2
      %s298 = sadd.s32 %s296, %s297
      %s299 = smul.addr %s298, 8
      %s300 = scalar_lea.vmem %s1, %s299
      %p301 = pneg %p81
      %p302 = pneg %p78
      %p303 = pneg %p102
      %p304 = pneg %p99
      %p305 = pneg %p123
      %p306 = pneg %p120
      %p307 = pneg %p144
      %p308 = pneg %p141
      %p309 = pneg %p165
      %p310 = pneg %p162
      %p311 = pneg %p186
      %p312 = pneg %p183
      %p313 = pneg %p214
      %p314 = pneg %p211
      %s315 = smul.u32 2, %s23
      %p316 = scmp.lt.s32.totalorder %s22, 1
      %s317 = scalar_select %p316, %s22, 1
      %p318 = scmp.lt.s32.totalorder %s315, 1
      %s319 = scalar_select %p318, %s315, 1
      %s320 = smul.addr %s317, 2
      %s321 = sadd.s32 %s319, %s320
      %s322 = smul.addr %s321, 8
      %s323 = scalar_lea.vmem %s7, %s322
      %s324 = smul.u32 2, %s23
      %p325 = scmp.lt.s32.totalorder %s22, 1
      %s326 = scalar_select %p325, %s22, 1
      %p327 = scmp.lt.s32.totalorder %s324, 1
      %s328 = scalar_select %p327, %s324, 1
      %s329 = smul.addr %s326, 2
      %s330 = sadd.s32 %s328, %s329
      %s331 = smul.addr %s330, 4
      %s332 = scalar_lea.vmem %s0, %s331
      %s333 = smul.u32 2, %s23
      %s334 = smul.u32 2, %s23
      %p335 = scmp.lt.s32.totalorder %s22, 1
      %s336 = scalar_select %p335, %s22, 1
      %p337 = scmp.lt.s32.totalorder %s334, 1
      %s338 = scalar_select %p337, %s334, 1
      %s339 = smul.addr %s336, 2
      %s340 = sadd.s32 %s338, %s339
      %s341 = smul.addr %s340, 8
      %s342 = scalar_lea.vmem %s1, %s341
      %s343 = smul.u32 2, %s23
      %s344 = smul.u32 2, %s23
      %p345 = scmp.lt.s32.totalorder %s22, 1
      %s346 = scalar_select %p345, %s22, 1
      %p347 = scmp.lt.s32.totalorder %s344, 1
      %s348 = scalar_select %p347, %s344, 1
      %s349 = smul.addr %s346, 2
      %s350 = sadd.s32 %s348, %s349
      %s351 = smul.addr %s350, 8
      %s352 = scalar_lea.vmem %s7, %s351
      %s353 = smul.u32 2, %s23
      %v354 = vld [vmem:[%s2] sm:$0xff]
      %v355 = vld [vmem:[%s332] sm:$0xff]
      %v356 = vld [vmem:[%s3] sm:$0xff]
      %358 = vset.pattern.permute.xlu0 0
      %359 = vperm.xlu0 %358, %v356
      %v360 = vpop.permute.xlu0 %359
      %v363 = vcombine.high %v355, %v355
      %vm364 = vcmask 31744
      %v366 = vsel %vm364, %v354, 0
      %vm368 = vcmask 1043456
      %v369 = vsel %vm368, %v355, 0
      %v371 = vsel %vm368, %v363, 0
      %373 = vmatprep.subr.mxu0 %v371
      %374 = vmatpush1.msra.mxu0 %v369
      %375 = vmatprep.subr.mxu0 0.0
      %376 = vmatpush1.msra.mxu0 0.0
      %377 = vmatprep.subr.mxu0 0.0
      %378 = vmatpush1.msra.mxu0 0.0
      %379 = vmatprep.subr.mxu0 0.0
      %380 = vmatpush1.msra.mxu0 0.0
      %381 = vmatprep.subr.mxu0 0.0
      %382 = vmatpush1.msra.mxu0 0.0
      %383 = vmatprep.subr.mxu0 0.0
      %384 = vmatpush1.msra.mxu0 0.0
      %385 = vmatprep.subr.mxu0 0.0
      %386 = vmatpush1.msra.mxu0 0.0
      %387 = vmatprep.subr.mxu0 0.0
      %388 = vmatpush1.msra.mxu0 0.0
      %389 = vmatprep.subr.mxu0 0.0
      %390 = vmatpush1.msra.mxu0 0.0
      %391 = vmatprep.subr.mxu0 0.0
      %392 = vmatpush1.msra.mxu0 0.0
      %393 = vmatprep.subr.mxu0 0.0
      %394 = vmatpush1.msra.mxu0 0.0
      %395 = vmatprep.subr.mxu0 0.0
      %396 = vmatpush1.msra.mxu0 0.0
      %397 = vmatprep.subr.mxu0 0.0
      %398 = vmatpush1.msra.mxu0 0.0
      %399 = vmatprep.subr.mxu0 0.0
      %400 = vmatpush1.msra.mxu0 0.0
      %401 = vmatprep.subr.mxu0 0.0
      %402 = vmatpush1.msra.mxu0 0.0
      %403 = vmatprep.subr.mxu0 0.0
      %404 = vmatpush1.msra.mxu0 0.0
      %405 = vmatprep.subr.mxu0 0.0
      %406 = vmatpush1.msra.mxu0 0.0
      %407 = vmatprep.subr.mxu0 0.0
      %408 = vmatpush1.msra.mxu0 0.0
      %409 = vmatprep.subr.mxu0 0.0
      %410 = vmatpush1.msra.mxu0 0.0
      %411 = vmatprep.subr.mxu0 0.0
      %412 = vmatpush1.msra.mxu0 0.0
      %413 = vmatprep.subr.mxu0 0.0
      %414 = vmatpush1.msra.mxu0 0.0
      %415 = vmatprep.subr.mxu0 0.0
      %416 = vmatpush1.msra.mxu0 0.0
      %417 = vmatprep.subr.mxu0 0.0
      %418 = vmatpush1.msra.mxu0 0.0
      %419 = vmatprep.subr.mxu0 0.0
      %420 = vmatpush1.msra.mxu0 0.0
      %421 = vmatprep.subr.mxu0 0.0
      %422 = vmatpush1.msra.mxu0 0.0
      %423 = vmatprep.subr.mxu0 0.0
      %424 = vmatpush1.msra.mxu0 0.0
      %425 = vmatprep.subr.mxu0 0.0
      %426 = vmatpush1.msra.mxu0 0.0
      %427 = vmatprep.subr.mxu0 0.0
      %428 = vmatpush1.msra.mxu0 0.0
      %429 = vmatprep.subr.mxu0 0.0
      %430 = vmatpush1.msra.mxu0 0.0
      %431 = vmatprep.subr.mxu0 0.0
      %432 = vmatpush1.msra.mxu0 0.0
      %433 = vmatprep.subr.mxu0 0.0
      %434 = vmatpush1.msra.mxu0 0.0
      %435 = vmatprep.subr.mxu0 0.0
      %436 = vmatpush1.msra.mxu0 0.0
      %437 = vmatprep.mubr.f32.mxu0 0.0
      %438 = vmatmul.mubr.f32.gmra.mrb[0].mxu0 %v366
      %v439 = vpop.f32.mrb[0].mxu0
      %v440 = vadd.f32 %v360, %v439
      %v441 = vpop.f32.mrb[0].mxu0
      %v442 = vadd.f32 %v360, %v441
      %443 = vdwg.mxu0
      %vm444 = vcmp.gt.f32.partialorder %v440, 0.0
      %vm445 = vcmp.gt.f32.partialorder %v442, 0.0
      %v446 = vmul.f32 %v440, 0.2
      %v447 = vmul.f32 %v442, 0.2
      %v448 = vsel %vm444, %v440, %v446
      %v449 = vsel %vm445, %v442, %v447
      %v450 = vld [vmem:[%s4] sm:$0xff]
      %v451 = vld [vmem:[%s5] sm:$0xff]
      %v452 = vld [vmem:[%s342] sm:$0xff]
      %v453 = vld [vmem:[%s342 + $0x8] sm:$0xff]
      %vm454 = vcmask 64512
      %v456 = vsel %vm454, %v451, 0
      %458 = vmatprep.subr.mxu0 %v453
      %459 = vmatpush1.msra.mxu0 %v452
      %460 = vmatprep.subr.mxu0 0.0
      %461 = vmatpush1.msra.mxu0 0.0
      %462 = vmatprep.subr.mxu0 0.0
      %463 = vmatpush1.msra.mxu0 0.0
      %464 = vmatprep.subr.mxu0 0.0
      %465 = vmatpush1.msra.mxu0 0.0
      %466 = vmatprep.subr.mxu0 0.0
      %467 = vmatpush1.msra.mxu0 0.0
      %468 = vmatprep.subr.mxu0 0.0
      %469 = vmatpush1.msra.mxu0 0.0
      %470 = vmatprep.subr.mxu0 0.0
      %471 = vmatpush1.msra.mxu0 0.0
      %472 = vmatprep.subr.mxu0 0.0
      %473 = vmatpush1.msra.mxu0 0.0
      %474 = vmatprep.subr.mxu0 0.0
      %475 = vmatpush1.msra.mxu0 0.0
      %476 = vmatprep.subr.mxu0 0.0
      %477 = vmatpush1.msra.mxu0 0.0
      %478 = vmatprep.subr.mxu0 0.0
      %479 = vmatpush1.msra.mxu0 0.0
      %480 = vmatprep.subr.mxu0 0.0
      %481 = vmatpush1.msra.mxu0 0.0
      %482 = vmatprep.subr.mxu0 0.0
      %483 = vmatpush1.msra.mxu0 0.0
      %484 = vmatprep.subr.mxu0 0.0
      %485 = vmatpush1.msra.mxu0 0.0
      %486 = vmatprep.subr.mxu0 0.0
      %487 = vmatpush1.msra.mxu0 0.0
      %488 = vmatprep.subr.mxu0 0.0
      %489 = vmatpush1.msra.mxu0 0.0
      %490 = vmatprep.subr.mxu0 0.0
      %491 = vmatpush1.msra.mxu0 0.0
      %492 = vmatprep.subr.mxu0 0.0
      %493 = vmatpush1.msra.mxu0 0.0
      %494 = vmatprep.subr.mxu0 0.0
      %495 = vmatpush1.msra.mxu0 0.0
      %496 = vmatprep.subr.mxu0 0.0
      %497 = vmatpush1.msra.mxu0 0.0
      %498 = vmatprep.subr.mxu0 0.0
      %499 = vmatpush1.msra.mxu0 0.0
      %500 = vmatprep.subr.mxu0 0.0
      %501 = vmatpush1.msra.mxu0 0.0
      %502 = vmatprep.subr.mxu0 0.0
      %503 = vmatpush1.msra.mxu0 0.0
      %504 = vmatprep.subr.mxu0 0.0
      %505 = vmatpush1.msra.mxu0 0.0
      %506 = vmatprep.subr.mxu0 0.0
      %507 = vmatpush1.msra.mxu0 0.0
      %508 = vmatprep.subr.mxu0 0.0
      %509 = vmatpush1.msra.mxu0 0.0
      %510 = vmatprep.subr.mxu0 0.0
      %511 = vmatpush1.msra.mxu0 0.0
      %512 = vmatprep.subr.mxu0 0.0
      %513 = vmatpush1.msra.mxu0 0.0
      %514 = vmatprep.subr.mxu0 0.0
      %515 = vmatpush1.msra.mxu0 0.0
      %516 = vmatprep.subr.mxu0 0.0
      %517 = vmatpush1.msra.mxu0 0.0
      %518 = vmatprep.subr.mxu0 0.0
      %519 = vmatpush1.msra.mxu0 0.0
      %520 = vmatprep.subr.mxu0 0.0
      %521 = vmatpush1.msra.mxu0 0.0
      %522 = vmatprep.mubr.f32.mxu0 0.0
      %523 = vmatmul.mubr.f32.gmra.mrb[0].mxu0 %v456
      %v524 = vpop.f32.mrb[0].mxu0
      %v525 = vadd.f32 0.0, %v524
      %v526 = vpop.f32.mrb[0].mxu0
      %v527 = vadd.f32 0.0, %v526
      %528 = vdwg.mxu0
      %v530 = vsel %vm454, %v450, 0
      %532 = vmatprep.subr.mxu0 %v449
      %533 = vmatpush1.msra.mxu0 %v448
      %534 = vmatprep.subr.mxu0 0.0
      %535 = vmatpush1.msra.mxu0 0.0
      %536 = vmatprep.subr.mxu0 0.0
      %537 = vmatpush1.msra.mxu0 0.0
      %538 = vmatprep.subr.mxu0 0.0
      %539 = vmatpush1.msra.mxu0 0.0
      %540 = vmatprep.subr.mxu0 0.0
      %541 = vmatpush1.msra.mxu0 0.0
      %542 = vmatprep.subr.mxu0 0.0
      %543 = vmatpush1.msra.mxu0 0.0
      %544 = vmatprep.subr.mxu0 0.0
      %545 = vmatpush1.msra.mxu0 0.0
      %546 = vmatprep.subr.mxu0 0.0
      %547 = vmatpush1.msra.mxu0 0.0
      %548 = vmatprep.subr.mxu0 0.0
      %549 = vmatpush1.msra.mxu0 0.0
      %550 = vmatprep.subr.mxu0 0.0
      %551 = vmatpush1.msra.mxu0 0.0
      %552 = vmatprep.subr.mxu0 0.0
      %553 = vmatpush1.msra.mxu0 0.0
      %554 = vmatprep.subr.mxu0 0.0
      %555 = vmatpush1.msra.mxu0 0.0
      %556 = vmatprep.subr.mxu0 0.0
      %557 = vmatpush1.msra.mxu0 0.0
      %558 = vmatprep.subr.mxu0 0.0
      %559 = vmatpush1.msra.mxu0 0.0
      %560 = vmatprep.subr.mxu0 0.0
      %561 = vmatpush1.msra.mxu0 0.0
      %562 = vmatprep.subr.mxu0 0.0
      %563 = vmatpush1.msra.mxu0 0.0
      %564 = vmatprep.subr.mxu0 0.0
      %565 = vmatpush1.msra.mxu0 0.0
      %566 = vmatprep.subr.mxu0 0.0
      %567 = vmatpush1.msra.mxu0 0.0
      %568 = vmatprep.subr.mxu0 0.0
      %569 = vmatpush1.msra.mxu0 0.0
      %570 = vmatprep.subr.mxu0 0.0
      %571 = vmatpush1.msra.mxu0 0.0
      %572 = vmatprep.subr.mxu0 0.0
      %573 = vmatpush1.msra.mxu0 0.0
      %574 = vmatprep.subr.mxu0 0.0
      %575 = vmatpush1.msra.mxu0 0.0
      %576 = vmatprep.subr.mxu0 0.0
      %577 = vmatpush1.msra.mxu0 0.0
      %578 = vmatprep.subr.mxu0 0.0
      %579 = vmatpush1.msra.mxu0 0.0
      %580 = vmatprep.subr.mxu0 0.0
      %581 = vmatpush1.msra.mxu0 0.0
      %582 = vmatprep.subr.mxu0 0.0
      %583 = vmatpush1.msra.mxu0 0.0
      %584 = vmatprep.subr.mxu0 0.0
      %585 = vmatpush1.msra.mxu0 0.0
      %586 = vmatprep.subr.mxu0 0.0
      %587 = vmatpush1.msra.mxu0 0.0
      %588 = vmatprep.subr.mxu0 0.0
      %589 = vmatpush1.msra.mxu0 0.0
      %590 = vmatprep.subr.mxu0 0.0
      %591 = vmatpush1.msra.mxu0 0.0
      %592 = vmatprep.subr.mxu0 0.0
      %593 = vmatpush1.msra.mxu0 0.0
      %594 = vmatprep.subr.mxu0 0.0
      %595 = vmatpush1.msra.mxu0 0.0
      %596 = vmatprep.mubr.f32.mxu0 0.0
      %597 = vmatmul.mubr.f32.gmra.mrb[0].mxu0 %v530
      %v598 = vpop.f32.mrb[0].mxu0
      %v599 = vadd.f32 %v525, %v598
      %v600 = vpop.f32.mrb[0].mxu0
      %v601 = vadd.f32 %v527, %v600
      %602 = vdwg.mxu0
      %v603 = vld [vmem:[%s6] sm:$0xff]
      %605 = vset.pattern.permute.xlu0 0
      %606 = vperm.xlu0 %605, %v603
      %v607 = vpop.permute.xlu0 %606
      %v609 = vadd.f32 %v599, %v607
      %v610 = vadd.f32 %v601, %v607
      %vm611 = vcmp.gt.f32.partialorder %v609, 0.0
      %vm612 = vcmp.gt.f32.partialorder %v610, 0.0
      %v613 = vmul.f32 %v609, 0.2
      %v614 = vmul.f32 %v610, 0.2
      %v615 = vsel %vm611, %v609, %v613
      %v616 = vsel %vm612, %v610, %v614
      %617 = vst [vmem:[%s352] sm:$0xff] %v615
      %618 = vst [vmem:[%s352 + $0x8] sm:$0xff] %v616
      %s619 = smul.u32 2, %s23
      %p620 = scmp.lt.s32.totalorder %s22, 1
      %s621 = scalar_select %p620, %s22, 1
      %p622 = scmp.lt.s32.totalorder %s619, 1
      %s623 = scalar_select %p622, %s619, 1
      %s624 = smul.addr %s621, 2
      %s625 = sadd.s32 %s623, %s624
      %s626 = smul.addr %s625, 8
      %s627 = scalar_lea.vmem %s7, %s626
      // Predicated region
      $region49: #{guide_forward.1} parent=47 // pred_check
        %p628 = pneg %p211
      $region50: #{guide_forward.1} parent=47 // pred_check_branch
        %630 = sbr.rel (%p628) target = $region52
      $region51: #{guide_forward.1} parent=47 // pred_region
        %s631 = smul.u32 2, %s23
      $region52: #{guide_forward.1} parent=47 // pred_fallthru
        _
    $region48: #{guide_forward.1} parent=5 // pred_fallthru
      _
    %p632 = scmp.le.s32.totalorder 2, %s13
    // Predicated region
    $region53: #{guide_forward.1} parent=5 // pred_check
      %p633 = pneg %p632
    $region54: #{guide_forward.1} parent=5 // pred_check_branch
      %635 = sbr.rel (%p633) target = $region56
    $region55: #{guide_forward.1} parent=5 // pred_region
      %s636 = ssub.s32 %s13, 2
      // Predicated region
      $region57: #{guide_forward.1} parent=55 // pred_check
        %p637 = pneg %p217
      $region58: #{guide_forward.1} parent=55 // pred_check_branch
        %639 = sbr.rel (%p637) target = $region60
      $region59: #{guide_forward.1} parent=55 // pred_region
        %s640 = smul.u32 2, %s25
        %p641 = scmp.lt.s32.totalorder %s24, 1
        %s642 = scalar_select %p641, %s24, 1
        %p643 = scmp.lt.s32.totalorder %s640, 1
        %s644 = scalar_select %p643, %s640, 1
        %s645 = smul.addr %s642, 2
        %s646 = sadd.s32 %s644, %s645
        %s647 = smul.addr %s646, 8
        %s648 = scalar_lea.vmem %s7, %s647
      $region60: #{guide_forward.1} parent=55 // pred_fallthru
        _
    $region56: #{guide_forward.1} parent=5 // pred_fallthru
      _
  $region6: #{guide_forward.1} parent=0 // loop_footer
    %s17 = sadd.s32 1, %s13
  $region7: #{guide_forward.1} parent=0 // loop_footer_branch
    %12 = sbr.rel target = $region3
  $region8: #{guide_forward.1} parent=0 // loop_exit
    _

</llo_original>
